<compile_context>
chip_gen: v7x
topology: tpu7x:2x2x1
jax: 0.10.0
libtpu: 0.0.40
codegen_flags: <defaults>
</compile_context>

<pallas_src>
import jax
import jax.numpy as jnp
from jax.experimental import pallas as pl
from jax.experimental.pallas import tpu as pltpu

INPUT_SIZE = 6    # left, right, center, robot_found, floor_color, distance_to_wall
HIDDEN_SIZE = 32
OUTPUT_SIZE = 2

# Packed parameter slab (16, 128) f32, everything not listed is ZERO:
#   rows 0..5 , lanes 0:32 : w1  (INPUT_SIZE, HIDDEN_SIZE)   (rows 6..7 zero pad -> K=8 for MXU)
#   row  8    , lanes 0:32 : b1
#   rows 9..10, lanes 0:32 : w2.T (column j of w2 in row 9+j)
#   row  11   , lanes 0:2  : b2
#   row  12   , lane 0     : 1.0  (one-hot for output lane 0)
#   row  13   , lane 1     : 1.0  (one-hot for output lane 1)
_SLAB_ROWS = 16
_SLAB_LANES = 128
_W1_ROWS = 8          # w1 zero-padded to 8 contraction rows
_B1_ROW = 8
_W2_ROW = 9
_B2_ROW = 11
_OH0_ROW = 12
_OH1_ROW = 13

TILE_B = 256          # batch tile: multiple of 8 (f32 sublanes); >=256 so MXU is worthwhile on v6e


def _sigmoid(h):
    # exp on the EUP + approximate reciprocal on the EUP -> keeps the VALU
    # slots free (no multi-op f32 divide sequence).
    return pl.reciprocal(1.0 + jnp.exp(-h), approx=True)


# ----------------------------- batched kernel ------------------------------
def _avoid_mlp_kernel_batched(x_ref, p_ref, out_ref):
    # x_ref  : VMEM (TILE_B, 8)   f32  (sensors in lanes 0:6, lanes 6:8 zero)
    # p_ref  : VMEM (16, 128)     f32  packed parameter slab (resident: index_map -> (0,0))
    # out_ref: VMEM (TILE_B, 128) f32  (results in lanes 0:2)

    # ---- hidden layer: h = x @ w1 + b1 (MXU, K=8 zero-padded) ----
    h = jnp.dot(x_ref[...], p_ref[0:_W1_ROWS, :],
                preferred_element_type=jnp.float32)
    h = h + p_ref[_B1_ROW:_B1_ROW + 1, :]
    act = _sigmoid(h)  # (TILE_B, 128); lanes 32:128 = sigmoid(0)=0.5, masked by zero w2 below
    # TODO(synk): pack 4 samples' 32 hidden units per 128-lane row before the
    # sigmoid to use the full EUP width (currently 75% of EUP lanes are idle).

    # ---- output layer: two lane reductions (VPU mul + XLU reduce) ----
    o0 = jnp.sum(act * p_ref[_W2_ROW:_W2_ROW + 1, :], axis=-1, keepdims=True)       # (TILE_B, 1)
    o1 = jnp.sum(act * p_ref[_W2_ROW + 1:_W2_ROW + 2, :], axis=-1, keepdims=True)   # (TILE_B, 1)

    # place o0 -> lane 0, o1 -> lane 1 via pre-packed one-hot rows (no iota/where)
    sums = o0 * p_ref[_OH0_ROW:_OH0_ROW + 1, :] + o1 * p_ref[_OH1_ROW:_OH1_ROW + 1, :]
    out_ref[...] = _sigmoid(sums + p_ref[_B2_ROW:_B2_ROW + 1, :])   # lane-dense unmasked store


# -------------------------- single-sample kernel ---------------------------
def _avoid_mlp_kernel_single(x_ref, p_ref, out_ref):
    # x_ref  : SMEM (6,) f32 sensors
    # p_ref  : VMEM (16, 128) f32 packed parameter slab
    # out_ref: VMEM (1, 128) f32 (results in lanes 0:2)
    h = p_ref[_B1_ROW:_B1_ROW + 1, :]                     # (1, 128) start from b1
    for k in range(INPUT_SIZE):                           # unrolled 6-term scalar FMA (VPU)
        h = h + x_ref[k] * p_ref[k:k + 1, :]
    act = _sigmoid(h)

    o0 = jnp.sum(act * p_ref[_W2_ROW:_W2_ROW + 1, :], axis=-1, keepdims=True)       # (1, 1)
    o1 = jnp.sum(act * p_ref[_W2_ROW + 1:_W2_ROW + 2, :], axis=-1, keepdims=True)   # (1, 1)
    sums = o0 * p_ref[_OH0_ROW:_OH0_ROW + 1, :] + o1 * p_ref[_OH1_ROW:_OH1_ROW + 1, :]
    out_ref[...] = _sigmoid(sums + p_ref[_B2_ROW:_B2_ROW + 1, :])


# ------------------------------ param packing ------------------------------
def pack_params(w1, b1, w2, b2):
    """One-time parameter prep: pack all weights/biases into one (16,128) slab.

    The slab MUST be zero everywhere outside the filled regions (the kernels
    rely on zero padding to mask unused hidden/output lanes)."""
    assert w1.shape == (INPUT_SIZE, HIDDEN_SIZE)
    assert b1.shape == (HIDDEN_SIZE,)
    assert w2.shape == (HIDDEN_SIZE, OUTPUT_SIZE)
    assert b2.shape == (OUTPUT_SIZE,)
    slab = jnp.zeros((_SLAB_ROWS, _SLAB_LANES), jnp.float32)   # zero init is REQUIRED
    slab = slab.at[0:INPUT_SIZE, 0:HIDDEN_SIZE].set(w1.astype(jnp.float32))
    slab = slab.at[_B1_ROW, 0:HIDDEN_SIZE].set(b1.astype(jnp.float32))
    slab = slab.at[_W2_ROW:_W2_ROW + OUTPUT_SIZE, 0:HIDDEN_SIZE].set(
        w2.astype(jnp.float32).T)
    slab = slab.at[_B2_ROW, 0:OUTPUT_SIZE].set(b2.astype(jnp.float32))
    slab = slab.at[_OH0_ROW, 0].set(1.0)
    slab = slab.at[_OH1_ROW, 1].set(1.0)
    return slab


# -------------------------------- wrappers ---------------------------------
@jax.jit
def avoid_model_forward_batched(x_batch, param_slab):
    """Primary path. x_batch: (B, 6) f32 sensor vectors -> (B, 2) f32."""
    B = x_batch.shape[0]
    n_tiles = pl.cdiv(B, TILE_B)
    b_pad = n_tiles * TILE_B
    # pad sensors to (B_pad, 8): lanes 6:8 zero, rows B: zero (amortized over B)
    x_p = jnp.zeros((b_pad, 8), jnp.float32)
    x_p = x_p.at[:B, :INPUT_SIZE].set(x_batch.astype(jnp.float32))

    out = pl.pallas_call(
        _avoid_mlp_kernel_batched,
        out_shape=jax.ShapeDtypeStruct((b_pad, _SLAB_LANES), jnp.float32),
        grid=(n_tiles,),
        in_specs=[
            pl.BlockSpec((TILE_B, 8), lambda i: (i, 0)),                 # sensors tile
            pl.BlockSpec((_SLAB_ROWS, _SLAB_LANES), lambda i: (0, 0)),   # slab: resident, 1 DMA
        ],
        out_specs=pl.BlockSpec((TILE_B, _SLAB_LANES), lambda i: (i, 0)),
        compiler_params=pltpu.CompilerParams(
            dimension_semantics=("parallel",)),                          # v7x: split across 2 TCs
    )(x_p, param_slab)
    return out[:B, :OUTPUT_SIZE]


@jax.jit
def avoid_model_forward(left, right, center, robot_found, floor_color,
                        distance_to_wall, param_slab):
    """Single-sample path matching the PyTorch forward signature -> (2,) f32.

    For throughput, prefer avoid_model_forward_batched (per-call dispatch
    overhead dominates a 200-FLOP body at B=1)."""
    x = jnp.stack([left, right, center, robot_found, floor_color,
                   distance_to_wall]).astype(jnp.float32)        # (6,) straight into SMEM
    row = pl.pallas_call(
        _avoid_mlp_kernel_single,
        out_shape=jax.ShapeDtypeStruct((1, _SLAB_LANES), jnp.float32),
        in_specs=[
            pl.BlockSpec(memory_space=pltpu.MemorySpace.SMEM),   # sensors
            pl.BlockSpec(memory_space=pltpu.MemorySpace.VMEM),   # packed params
        ],
        out_specs=pl.BlockSpec(memory_space=pltpu.MemorySpace.VMEM),
    )(x, param_slab)
    return row[0, :OUTPUT_SIZE]


# ------------------------------ init / reference ---------------------------
def init_params(key, input_size=INPUT_SIZE, hidden_size=HIDDEN_SIZE,
                output_size=OUTPUT_SIZE):
    """Deterministic init mimicking nn.Linear default (uniform +-1/sqrt(fan_in)).

    Weights are stored as (in_features, out_features)."""
    k1, k2, k3, k4 = jax.random.split(key, 4)
    bound1 = 1.0 / jnp.sqrt(jnp.float32(input_size))
    bound2 = 1.0 / jnp.sqrt(jnp.float32(hidden_size))
    w1 = jax.random.uniform(k1, (input_size, hidden_size), jnp.float32,
                            -bound1, bound1)
    b1 = jax.random.uniform(k2, (hidden_size,), jnp.float32, -bound1, bound1)
    w2 = jax.random.uniform(k3, (hidden_size, output_size), jnp.float32,
                            -bound2, bound2)
    b2 = jax.random.uniform(k4, (output_size,), jnp.float32, -bound2, bound2)
    return w1, b1, w2, b2


def _reference_forward(x, w1, b1, w2, b2):
    h = jax.nn.sigmoid(x @ w1 + b1)
    return jax.nn.sigmoid(h @ w2 + b2)


if __name__ == "__main__":
    key = jax.random.PRNGKey(0)
    pkey, xkey, skey = jax.random.split(key, 3)
    w1, b1, w2, b2 = init_params(pkey)

    # One-time parameter packing (hoisted out of the per-call hot path).
    param_slab = pack_params(w1, b1, w2, b2)

    # ---- batched path (primary): B=500 sensor vectors, exercises padding + grid ----
    B = 500
    x_batch = jax.random.uniform(xkey, (B, INPUT_SIZE), jnp.float32)
    out_b = jax.block_until_ready(avoid_model_forward_batched(x_batch, param_slab))
    ref_b = _reference_forward(x_batch, w1, b1, w2, b2)
    assert out_b.shape == (B, OUTPUT_SIZE)
    # tolerance covers the approx-reciprocal (EUP) sigmoid path
    assert jnp.allclose(out_b, ref_b, atol=2e-3, rtol=2e-3), (out_b[:2], ref_b[:2])

    # ---- single-sample path (matches PyTorch forward signature) ----
    s = jax.random.uniform(skey, (INPUT_SIZE,), jnp.float32)
    out_1 = jax.block_until_ready(
        avoid_model_forward(s[0], s[1], s[2], s[3], s[4], s[5], param_slab))
    ref_1 = _reference_forward(s, w1, b1, w2, b2)
    assert out_1.shape == (OUTPUT_SIZE,)
    assert jnp.allclose(out_1, ref_1, atol=2e-3, rtol=2e-3), (out_1, ref_1)

    print("KERNEL_OK")
</pallas_src>

<mosaic_0001>
module attributes {stable_mosaic.version = 11 : i64} {
  func.func @_avoid_mlp_kernel_batched(%arg0: i32, %arg1: memref<256x8xf32, #tpu.memory_space<vmem>>, %arg2: memref<16x128xf32, #tpu.memory_space<vmem>>, %arg3: memref<256x128xf32, #tpu.memory_space<vmem>>) attributes {dimension_semantics = [#tpu.dimension_semantics<parallel>], iteration_bounds = array<i64: 2>, scalar_prefetch = 0 : i64, scratch_operands = 0 : i64, tpu.core_type = #tpu.core_type<tc>, window_params = [{transform_indices = @transform_0, window_bounds = array<i64: 256, 8>}, {pipeline_mode = #tpu.pipeline_mode<synchronous>, transform_indices = @transform_1, window_bounds = array<i64: 16, 128>}, {transform_indices = @transform_2, window_bounds = array<i64: 256, 128>}]} {
    %c0 = arith.constant 0 : index
    %c0_0 = arith.constant 0 : index
    %0 = vector.load %arg1[%c0, %c0_0] : memref<256x8xf32, #tpu.memory_space<vmem>>, vector<256x8xf32>
    %c0_1 = arith.constant 0 : index
    %c0_2 = arith.constant 0 : index
    %1 = vector.load %arg2[%c0_1, %c0_2] : memref<16x128xf32, #tpu.memory_space<vmem>>, vector<8x128xf32>
    %cst = arith.constant dense<0.000000e+00> : vector<256x128xf32>
    %2 = tpu.matmul %0, %1, %cst {dimension_numbers = #tpu.dot_dimension_numbers<[1], [0], [0], [1], [0, 0, 1, 1], [], []>} : vector<256x8xf32>, vector<8x128xf32>, vector<256x128xf32> -> vector<256x128xf32>
    %c8 = arith.constant 8 : index
    %c0_3 = arith.constant 0 : index
    %3 = vector.load %arg2[%c8, %c0_3] : memref<16x128xf32, #tpu.memory_space<vmem>>, vector<1x128xf32>
    %4 = vector.broadcast %3 : vector<1x128xf32> to vector<256x128xf32>
    %5 = arith.addf %2, %4 : vector<256x128xf32>
    %cst_4 = arith.constant 0.000000e+00 : f32
    %6 = vector.broadcast %cst_4 : f32 to vector<256x128xf32>
    %7 = arith.subf %6, %5 : vector<256x128xf32>
    %8 = math.exp %7 : vector<256x128xf32>
    %cst_5 = arith.constant 1.000000e+00 : f32
    %9 = vector.broadcast %cst_5 : f32 to vector<256x128xf32>
    %10 = arith.addf %9, %8 : vector<256x128xf32>
    %11 = tpu.reciprocal %10 {approx = true} : vector<256x128xf32> -> vector<256x128xf32>
    %c9 = arith.constant 9 : index
    %c0_6 = arith.constant 0 : index
    %12 = vector.load %arg2[%c9, %c0_6] : memref<16x128xf32, #tpu.memory_space<vmem>>, vector<1x128xf32>
    %13 = vector.broadcast %12 : vector<1x128xf32> to vector<256x128xf32>
    %14 = arith.mulf %11, %13 : vector<256x128xf32>
    %cst_7 = arith.constant dense<0.000000e+00> : vector<256xf32>
    %15 = vector.multi_reduction <add>, %14, %cst_7 [1] : vector<256x128xf32> to vector<256xf32>
    %16 = vector.shape_cast %15 : vector<256xf32> to vector<256x1xf32>
    %c10 = arith.constant 10 : index
    %c0_8 = arith.constant 0 : index
    %17 = vector.load %arg2[%c10, %c0_8] : memref<16x128xf32, #tpu.memory_space<vmem>>, vector<1x128xf32>
    %18 = vector.broadcast %17 : vector<1x128xf32> to vector<256x128xf32>
    %19 = arith.mulf %11, %18 : vector<256x128xf32>
    %cst_9 = arith.constant dense<0.000000e+00> : vector<256xf32>
    %20 = vector.multi_reduction <add>, %19, %cst_9 [1] : vector<256x128xf32> to vector<256xf32>
    %21 = vector.shape_cast %20 : vector<256xf32> to vector<256x1xf32>
    %c12 = arith.constant 12 : index
    %c0_10 = arith.constant 0 : index
    %22 = vector.load %arg2[%c12, %c0_10] : memref<16x128xf32, #tpu.memory_space<vmem>>, vector<1x128xf32>
    %23 = vector.broadcast %16 : vector<256x1xf32> to vector<256x128xf32>
    %24 = vector.broadcast %22 : vector<1x128xf32> to vector<256x128xf32>
    %25 = arith.mulf %23, %24 : vector<256x128xf32>
    %c13 = arith.constant 13 : index
    %c0_11 = arith.constant 0 : index
    %26 = vector.load %arg2[%c13, %c0_11] : memref<16x128xf32, #tpu.memory_space<vmem>>, vector<1x128xf32>
    %27 = vector.broadcast %21 : vector<256x1xf32> to vector<256x128xf32>
    %28 = vector.broadcast %26 : vector<1x128xf32> to vector<256x128xf32>
    %29 = arith.mulf %27, %28 : vector<256x128xf32>
    %30 = arith.addf %25, %29 : vector<256x128xf32>
    %c11 = arith.constant 11 : index
    %c0_12 = arith.constant 0 : index
    %31 = vector.load %arg2[%c11, %c0_12] : memref<16x128xf32, #tpu.memory_space<vmem>>, vector<1x128xf32>
    %32 = vector.broadcast %31 : vector<1x128xf32> to vector<256x128xf32>
    %33 = arith.addf %30, %32 : vector<256x128xf32>
    %cst_13 = arith.constant 0.000000e+00 : f32
    %34 = vector.broadcast %cst_13 : f32 to vector<256x128xf32>
    %35 = arith.subf %34, %33 : vector<256x128xf32>
    %36 = math.exp %35 : vector<256x128xf32>
    %cst_14 = arith.constant 1.000000e+00 : f32
    %37 = vector.broadcast %cst_14 : f32 to vector<256x128xf32>
    %38 = arith.addf %37, %36 : vector<256x128xf32>
    %39 = tpu.reciprocal %38 {approx = true} : vector<256x128xf32> -> vector<256x128xf32>
    %c0_15 = arith.constant 0 : index
    %c0_16 = arith.constant 0 : index
    %40 = vector.load %arg3[%c0_15, %c0_16] : memref<256x128xf32, #tpu.memory_space<vmem>>, vector<256x128xf32>
    tpu.vector_store %arg3[%c0_15, %c0_16], %39 {strides = array<i32>} : memref<256x128xf32, #tpu.memory_space<vmem>>, vector<256x128xf32>,
    return
  }
  func.func @transform_0(%arg0: i32) -> (i32, i32) {
    %c0_i32 = arith.constant 0 : i32
    %c0_i32_0 = arith.constant 0 : i32
    return %arg0, %c0_i32 : i32, i32
  }
  func.func @transform_1(%arg0: i32) -> (i32, i32) {
    %c0_i32 = arith.constant 0 : i32
    %c0_i32_0 = arith.constant 0 : i32
    %c0_i32_1 = arith.constant 0 : i32
    return %c0_i32, %c0_i32_0 : i32, i32
  }
  func.func @transform_2(%arg0: i32) -> (i32, i32) {
    %c0_i32 = arith.constant 0 : i32
    %c0_i32_0 = arith.constant 0 : i32
    return %arg0, %c0_i32 : i32, i32
  }
}

</mosaic_0001>

<llo_original>
// kernel: avoid_model_forward_batched.1
$region0: #{avoid_model_forward_batched.1}
  #allocation0 [shape = 'u32[]', space=smem, size = 0x4, offset = 0x4, fixed_abs, tag = 'smem constant byte address 0x4 - core index']
  #allocation1 [shape = 'u32[144,128]{1,0:T(1,128)}', space=vmem, size = 0x12000, scoped, tag = 'internal scratch']
  %s0 = inlined_call_operand.vmem [shape: f32[512,8], index: 0, kind: input, shape index: {}]
  %s1 = inlined_call_operand.vmem [shape: f32[16,128], index: 1, kind: input, shape index: {}]
  %s2 = inlined_call_operand.vmem [shape: f32[512,128], index: 2, kind: output, shape index: {}]
  %s3 = sld [smem:[#allocation0]]
  $region41: #{avoid_model_forward_batched.1} parent=0
    _
  %s5 = ssub.s32 1, %s3
  %s6 = scalar_select 0, %s5, %s3
  loop: start=0, step=1, limit=4
  $region2: #{avoid_model_forward_batched.1} parent=0 // loop_pre_header
    _
  $region3: #{avoid_model_forward_batched.1} parent=0 // loop_header
    %s8 = sphi 0, %s12
    %p9 = scmp.ge.s32.totalorder %s8, 4
    %s18 = sphi 0, %s20
    %s21 = sphi 0, %s18
    %s22 = sphi 0, %s21
    %s38 = sphi 0, %s22
    %s42 = sphi 0, %s42
    %s44 = sphi 0, %s42
    %s45 = sphi 0, %s44
    %s59 = sphi 0, %s45
    %s65 = sphi 0, %s67
    %s68 = sphi 0, %s65
    %s69 = sphi 0, %s68
    %s85 = sphi 0, %s69
  $region4: #{avoid_model_forward_batched.1} parent=0 // loop_header_branch
    %11 = sbr.rel (%p9) target = $region8
  $region5: #{avoid_model_forward_batched.1} parent=0 // loop_body
    %s13 = ssub.s32 %s8, 1
    %s14 = ssub.s32 %s8, 2
    %s15 = sadd.s32 %s8, 1
    %s16 = ssub.s32 %s8, %s15
    %p17 = scmp.eq.s32.totalorder %s16, 0
    %s19 = sadd.s32 %s18, 1
    %s20 = scalar_select %p17, %s18, %s19
    %p23 = pneg %p17
    %p24 = scmp.eq.s32.totalorder %s8, 1
    %p25 = por %p23, %p24
    %p26 = scmp.ne.s32.totalorder %s18, %s21
    %p27 = scmp.eq.s32.totalorder %s8, 0
    %p28 = por %p26, %p27
    %p29 = scmp.ne.s32.totalorder %s18, %s21
    %p30 = scmp.eq.s32.totalorder %s13, 1
    %p31 = por %p29, %p30
    %p32 = scmp.ne.s32.totalorder %s21, %s22
    %p33 = scmp.eq.s32.totalorder %s13, 0
    %p34 = por %p32, %p33
    %p35 = scmp.ne.s32.totalorder %s21, %s22
    %p36 = scmp.eq.s32.totalorder %s14, 1
    %p37 = por %p35, %p36
    %p39 = scmp.ne.s32.totalorder %s22, %s38
    %p40 = scmp.eq.s32.totalorder %s14, 0
    %p41 = por %p39, %p40
    %s43 = sadd.s32 %s42, 1
    %p46 = scmp.eq.s32.totalorder %s8, 1
    %p47 = scmp.ne.s32.totalorder %s42, %s44
    %p48 = scmp.eq.s32.totalorder %s8, 0
    %p49 = por %p47, %p48
    %p50 = scmp.ne.s32.totalorder %s42, %s44
    %p51 = scmp.eq.s32.totalorder %s13, 1
    %p52 = por %p50, %p51
    %p53 = scmp.ne.s32.totalorder %s44, %s45
    %p54 = scmp.eq.s32.totalorder %s13, 0
    %p55 = por %p53, %p54
    %p56 = scmp.ne.s32.totalorder %s44, %s45
    %p57 = scmp.eq.s32.totalorder %s14, 1
    %p58 = por %p56, %p57
    %p60 = scmp.ne.s32.totalorder %s45, %s59
    %p61 = scmp.eq.s32.totalorder %s14, 0
    %p62 = por %p60, %p61
    %s63 = ssub.s32 %s8, %s15
    %p64 = scmp.eq.s32.totalorder %s63, 0
    %s66 = sadd.s32 %s65, 1
    %s67 = scalar_select %p64, %s65, %s66
    %p70 = pneg %p64
    %p71 = scmp.eq.s32.totalorder %s8, 1
    %p72 = por %p70, %p71
    %p73 = scmp.ne.s32.totalorder %s65, %s68
    %p74 = scmp.eq.s32.totalorder %s8, 0
    %p75 = por %p73, %p74
    %p76 = scmp.ne.s32.totalorder %s65, %s68
    %p77 = scmp.eq.s32.totalorder %s13, 1
    %p78 = por %p76, %p77
    %p79 = scmp.ne.s32.totalorder %s68, %s69
    %p80 = scmp.eq.s32.totalorder %s13, 0
    %p81 = por %p79, %p80
    %p82 = scmp.ne.s32.totalorder %s68, %s69
    %p83 = scmp.eq.s32.totalorder %s14, 1
    %p84 = por %p82, %p83
    %p86 = scmp.ne.s32.totalorder %s69, %s85
    %p87 = scmp.eq.s32.totalorder %s14, 0
    %p88 = por %p86, %p87
    %p89 = scmp.le.s32.totalorder 1, %s8
    %p90 = scmp.lt.s32.totalorder %s8, 3
    %p91 = pnand %p89, %p90
    %p92 = pneg %p91
    // Predicated region
    $region9: #{avoid_model_forward_batched.1} parent=5 // pred_check
      _
    $region10: #{avoid_model_forward_batched.1} parent=5 // pred_check_branch
      %94 = sbr.rel (%p91) target = $region12
    $region11: #{avoid_model_forward_batched.1} parent=5 // pred_region
      %s95 = ssub.s32 %s8, 1
      // Predicated region
      $region13: #{avoid_model_forward_batched.1} parent=11 // pred_check
        %p96 = pneg %p55
      $region14: #{avoid_model_forward_batched.1} parent=11 // pred_check_branch
        %98 = sbr.rel (%p96) target = $region16
      $region15: #{avoid_model_forward_batched.1} parent=11 // pred_region
        _
      $region16: #{avoid_model_forward_batched.1} parent=11 // pred_fallthru
        _
    $region12: #{avoid_model_forward_batched.1} parent=5 // pred_fallthru
      _
    %p99 = scmp.lt.s32.totalorder %s8, 2
    // Predicated region
    $region17: #{avoid_model_forward_batched.1} parent=5 // pred_check
      %p100 = pneg %p99
    $region18: #{avoid_model_forward_batched.1} parent=5 // pred_check_branch
      %102 = sbr.rel (%p100) target = $region20
    $region19: #{avoid_model_forward_batched.1} parent=5 // pred_region
      // Predicated region
      $region21: #{avoid_model_forward_batched.1} parent=19 // pred_check
        %p103 = pneg %p28
      $region22: #{avoid_model_forward_batched.1} parent=19 // pred_check_branch
        %105 = sbr.rel (%p103) target = $region24
      $region23: #{avoid_model_forward_batched.1} parent=19 // pred_region
        %s106 = smul.u32 32, %s8
        %p107 = scmp.lt.s32.totalorder %s106, 63
        %s108 = scalar_select %p107, %s106, 63
        %s109 = smul.addr %s108, 8
        %s110 = scalar_lea.vmem %s0, %s109
        %s111 = smul.u32 32, %s8
      $region24: #{avoid_model_forward_batched.1} parent=19 // pred_fallthru
        _
    $region20: #{avoid_model_forward_batched.1} parent=5 // pred_fallthru
      _
    %p112 = scmp.le.s32.totalorder 1, %s8
    %p113 = scmp.lt.s32.totalorder %s8, 3
    %p114 = pnand %p112, %p113
    %p115 = pneg %p114
    // Predicated region
    $region25: #{avoid_model_forward_batched.1} parent=5 // pred_check
      _
    $region26: #{avoid_model_forward_batched.1} parent=5 // pred_check_branch
      %117 = sbr.rel (%p114) target = $region28
    $region27: #{avoid_model_forward_batched.1} parent=5 // pred_region
      %s118 = ssub.s32 %s8, 1
      %s119 = smul.u32 32, %s13
      %p120 = scmp.lt.s32.totalorder %s119, 63
      %s121 = scalar_select %p120, %s119, 63
      %s122 = smul.addr %s121, 8
      %s123 = scalar_lea.vmem %s0, %s122
      %p124 = pneg %p34
      %p125 = pneg %p31
      %p126 = pneg %p55
      %p127 = pneg %p52
      %p128 = pneg %p81
      %p129 = pneg %p78
      %s130 = smul.u32 32, %s13
      %p131 = scmp.lt.s32.totalorder %s130, 63
      %s132 = scalar_select %p131, %s130, 63
      %s133 = smul.addr %s132, 8
      %s134 = scalar_lea.vmem %s2, %s133
      %s135 = smul.u32 32, %s13
      %p136 = scmp.lt.s32.totalorder %s135, 63
      %s137 = scalar_select %p136, %s135, 63
      %s138 = smul.addr %s137, 8
      %s139 = scalar_lea.vmem %s0, %s138
      %s140 = smul.u32 32, %s13
      %s141 = smul.u32 32, %s13
      %p142 = scmp.lt.s32.totalorder %s141, 63
      %s143 = scalar_select %p142, %s141, 63
      %s144 = smul.addr %s143, 8
      %s145 = scalar_lea.vmem %s2, %s144
      %s146 = smul.u32 32, %s13
      %v147 = vld [vmem:[%s139] sm:$0xff]
      %v148 = vld [vmem:[%s139 + $0x8] sm:$0xff]
      %v149 = vld [vmem:[%s139 + $0x10] sm:$0xff]
      %v150 = vld [vmem:[%s139 + $0x18] sm:$0xff]
      %v151 = vld [vmem:[%s139 + $0x20] sm:$0xff]
      %v152 = vld [vmem:[%s139 + $0x28] sm:$0xff]
      %v153 = vld [vmem:[%s139 + $0x30] sm:$0xff]
      %v154 = vld [vmem:[%s139 + $0x38] sm:$0xff]
      %v155 = vld [vmem:[%s139 + $0x40] sm:$0xff]
      %v156 = vld [vmem:[%s139 + $0x48] sm:$0xff]
      %v157 = vld [vmem:[%s139 + $0x50] sm:$0xff]
      %v158 = vld [vmem:[%s139 + $0x58] sm:$0xff]
      %v159 = vld [vmem:[%s139 + $0x60] sm:$0xff]
      %v160 = vld [vmem:[%s139 + $0x68] sm:$0xff]
      %v161 = vld [vmem:[%s139 + $0x70] sm:$0xff]
      %v162 = vld [vmem:[%s139 + $0x78] sm:$0xff]
      %v163 = vld [vmem:[%s139 + $0x80] sm:$0xff]
      %v164 = vld [vmem:[%s139 + $0x88] sm:$0xff]
      %v165 = vld [vmem:[%s139 + $0x90] sm:$0xff]
      %v166 = vld [vmem:[%s139 + $0x98] sm:$0xff]
      %v167 = vld [vmem:[%s139 + $0xa0] sm:$0xff]
      %v168 = vld [vmem:[%s139 + $0xa8] sm:$0xff]
      %v169 = vld [vmem:[%s139 + $0xb0] sm:$0xff]
      %v170 = vld [vmem:[%s139 + $0xb8] sm:$0xff]
      %v171 = vld [vmem:[%s139 + $0xc0] sm:$0xff]
      %v172 = vld [vmem:[%s139 + $0xc8] sm:$0xff]
      %v173 = vld [vmem:[%s139 + $0xd0] sm:$0xff]
      %v174 = vld [vmem:[%s139 + $0xd8] sm:$0xff]
      %v175 = vld [vmem:[%s139 + $0xe0] sm:$0xff]
      %v176 = vld [vmem:[%s139 + $0xe8] sm:$0xff]
      %v177 = vld [vmem:[%s139 + $0xf0] sm:$0xff]
      %v178 = vld [vmem:[%s139 + $0xf8] sm:$0xff]
      %v179 = vld [vmem:[%s1] sm:$0xff]
      %v180 = vld [vmem:[%s1 + $0x8] sm:$0x1]
      %v181 = vlaneseq
      %v182 = vshrl.u32 %v181, 7
      %v183 = vsub.s32 0, %v182
      %v184 = vrot.slane %v180, %v183
      %vm185 = vcmask 64512
      %v187 = vsel %vm185, %v147, 0
      %v190 = vsel %vm185, %v148, 0
      %v193 = vsel %vm185, %v149, 0
      %v196 = vsel %vm185, %v150, 0
      %v199 = vsel %vm185, %v151, 0
      %v202 = vsel %vm185, %v152, 0
      %v205 = vsel %vm185, %v153, 0
      %v208 = vsel %vm185, %v154, 0
      %v211 = vsel %vm185, %v155, 0
      %v214 = vsel %vm185, %v156, 0
      %v217 = vsel %vm185, %v157, 0
      %v220 = vsel %vm185, %v158, 0
      %v223 = vsel %vm185, %v159, 0
      %v226 = vsel %vm185, %v160, 0
      %v229 = vsel %vm185, %v161, 0
      %v232 = vsel %vm185, %v162, 0
      %v235 = vsel %vm185, %v163, 0
      %v238 = vsel %vm185, %v164, 0
      %v241 = vsel %vm185, %v165, 0
      %v244 = vsel %vm185, %v166, 0
      %v247 = vsel %vm185, %v167, 0
      %v250 = vsel %vm185, %v168, 0
      %v253 = vsel %vm185, %v169, 0
      %v256 = vsel %vm185, %v170, 0
      %v259 = vsel %vm185, %v171, 0
      %v262 = vsel %vm185, %v172, 0
      %v265 = vsel %vm185, %v173, 0
      %v268 = vsel %vm185, %v174, 0
      %v271 = vsel %vm185, %v175, 0
      %v274 = vsel %vm185, %v176, 0
      %v277 = vsel %vm185, %v177, 0
      %v280 = vsel %vm185, %v178, 0
      %282 = vmatprep.subr.mxu0 0.0
      %283 = vmatpush1.msra.mxu0 %v179
      %284 = vmatprep.subr.mxu0 0.0
      %285 = vmatpush1.msra.mxu0 0.0
      %286 = vmatprep.subr.mxu0 0.0
      %287 = vmatpush1.msra.mxu0 0.0
      %288 = vmatprep.subr.mxu0 0.0
      %289 = vmatpush1.msra.mxu0 0.0
      %290 = vmatprep.subr.mxu0 0.0
      %291 = vmatpush1.msra.mxu0 0.0
      %292 = vmatprep.subr.mxu0 0.0
      %293 = vmatpush1.msra.mxu0 0.0
      %294 = vmatprep.subr.mxu0 0.0
      %295 = vmatpush1.msra.mxu0 0.0
      %296 = vmatprep.subr.mxu0 0.0
      %297 = vmatpush1.msra.mxu0 0.0
      %298 = vmatprep.subr.mxu0 0.0
      %299 = vmatpush1.msra.mxu0 0.0
      %300 = vmatprep.subr.mxu0 0.0
      %301 = vmatpush1.msra.mxu0 0.0
      %302 = vmatprep.subr.mxu0 0.0
      %303 = vmatpush1.msra.mxu0 0.0
      %304 = vmatprep.subr.mxu0 0.0
      %305 = vmatpush1.msra.mxu0 0.0
      %306 = vmatprep.subr.mxu0 0.0
      %307 = vmatpush1.msra.mxu0 0.0
      %308 = vmatprep.subr.mxu0 0.0
      %309 = vmatpush1.msra.mxu0 0.0
      %310 = vmatprep.subr.mxu0 0.0
      %311 = vmatpush1.msra.mxu0 0.0
      %312 = vmatprep.subr.mxu0 0.0
      %313 = vmatpush1.msra.mxu0 0.0
      %314 = vmatprep.subr.mxu0 0.0
      %315 = vmatpush1.msra.mxu0 0.0
      %316 = vmatprep.subr.mxu0 0.0
      %317 = vmatpush1.msra.mxu0 0.0
      %318 = vmatprep.subr.mxu0 0.0
      %319 = vmatpush1.msra.mxu0 0.0
      %320 = vmatprep.subr.mxu0 0.0
      %321 = vmatpush1.msra.mxu0 0.0
      %322 = vmatprep.subr.mxu0 0.0
      %323 = vmatpush1.msra.mxu0 0.0
      %324 = vmatprep.subr.mxu0 0.0
      %325 = vmatpush1.msra.mxu0 0.0
      %326 = vmatprep.subr.mxu0 0.0
      %327 = vmatpush1.msra.mxu0 0.0
      %328 = vmatprep.subr.mxu0 0.0
      %329 = vmatpush1.msra.mxu0 0.0
      %330 = vmatprep.subr.mxu0 0.0
      %331 = vmatpush1.msra.mxu0 0.0
      %332 = vmatprep.subr.mxu0 0.0
      %333 = vmatpush1.msra.mxu0 0.0
      %334 = vmatprep.subr.mxu0 0.0
      %335 = vmatpush1.msra.mxu0 0.0
      %336 = vmatprep.subr.mxu0 0.0
      %337 = vmatpush1.msra.mxu0 0.0
      %338 = vmatprep.subr.mxu0 0.0
      %339 = vmatpush1.msra.mxu0 0.0
      %340 = vmatprep.subr.mxu0 0.0
      %341 = vmatpush1.msra.mxu0 0.0
      %342 = vmatprep.subr.mxu0 0.0
      %343 = vmatpush1.msra.mxu0 0.0
      %344 = vmatprep.subr.mxu0 0.0
      %345 = vmatpush1.msra.mxu0 0.0
      %346 = vmatprep.mubr.f32.mxu0 0.0
      %347 = vmatmul.mubr.f32.gmra.mrb[0].mxu0 %v187
      %v348 = vpop.f32.mrb[0].mxu0
      %v349 = vadd.f32 %v184, %v348
      %v350 = vpop.f32.mrb[0].mxu0
      %351 = vmatprep.mubr.f32.mxu0 0.0
      %352 = vmatmul.mubr.f32.gmra.mrb[0].mxu0 %v190
      %v353 = vpop.f32.mrb[0].mxu0
      %v354 = vadd.f32 %v184, %v353
      %v355 = vpop.f32.mrb[0].mxu0
      %356 = vmatprep.mubr.f32.mxu0 0.0
      %357 = vmatmul.mubr.f32.gmra.mrb[0].mxu0 %v193
      %v358 = vpop.f32.mrb[0].mxu0
      %v359 = vadd.f32 %v184, %v358
      %v360 = vpop.f32.mrb[0].mxu0
      %361 = vmatprep.mubr.f32.mxu0 0.0
      %362 = vmatmul.mubr.f32.gmra.mrb[0].mxu0 %v196
      %v363 = vpop.f32.mrb[0].mxu0
      %v364 = vadd.f32 %v184, %v363
      %v365 = vpop.f32.mrb[0].mxu0
      %366 = vmatprep.mubr.f32.mxu0 0.0
      %367 = vmatmul.mubr.f32.gmra.mrb[0].mxu0 %v199
      %v368 = vpop.f32.mrb[0].mxu0
      %v369 = vadd.f32 %v184, %v368
      %v370 = vpop.f32.mrb[0].mxu0
      %371 = vmatprep.mubr.f32.mxu0 0.0
      %372 = vmatmul.mubr.f32.gmra.mrb[0].mxu0 %v202
      %v373 = vpop.f32.mrb[0].mxu0
      %v374 = vadd.f32 %v184, %v373
      %v375 = vpop.f32.mrb[0].mxu0
      %376 = vmatprep.mubr.f32.mxu0 0.0
      %377 = vmatmul.mubr.f32.gmra.mrb[0].mxu0 %v205
      %v378 = vpop.f32.mrb[0].mxu0
      %v379 = vadd.f32 %v184, %v378
      %v380 = vpop.f32.mrb[0].mxu0
      %381 = vmatprep.mubr.f32.mxu0 0.0
      %382 = vmatmul.mubr.f32.gmra.mrb[0].mxu0 %v208
      %v383 = vpop.f32.mrb[0].mxu0
      %v384 = vadd.f32 %v184, %v383
      %v385 = vpop.f32.mrb[0].mxu0
      %386 = vmatprep.mubr.f32.mxu0 0.0
      %387 = vmatmul.mubr.f32.gmra.mrb[0].mxu0 %v211
      %v388 = vpop.f32.mrb[0].mxu0
      %v389 = vadd.f32 %v184, %v388
      %v390 = vpop.f32.mrb[0].mxu0
      %391 = vmatprep.mubr.f32.mxu0 0.0
      %392 = vmatmul.mubr.f32.gmra.mrb[0].mxu0 %v214
      %v393 = vpop.f32.mrb[0].mxu0
      %v394 = vadd.f32 %v184, %v393
      %v395 = vpop.f32.mrb[0].mxu0
      %396 = vmatprep.mubr.f32.mxu0 0.0
      %397 = vmatmul.mubr.f32.gmra.mrb[0].mxu0 %v217
      %v398 = vpop.f32.mrb[0].mxu0
      %v399 = vadd.f32 %v184, %v398
      %v400 = vpop.f32.mrb[0].mxu0
      %401 = vmatprep.mubr.f32.mxu0 0.0
      %402 = vmatmul.mubr.f32.gmra.mrb[0].mxu0 %v220
      %v403 = vpop.f32.mrb[0].mxu0
      %v404 = vadd.f32 %v184, %v403
      %v405 = vpop.f32.mrb[0].mxu0
      %406 = vmatprep.mubr.f32.mxu0 0.0
      %407 = vmatmul.mubr.f32.gmra.mrb[0].mxu0 %v223
      %v408 = vpop.f32.mrb[0].mxu0
      %v409 = vadd.f32 %v184, %v408
      %v410 = vpop.f32.mrb[0].mxu0
      %411 = vmatprep.mubr.f32.mxu0 0.0
      %412 = vmatmul.mubr.f32.gmra.mrb[0].mxu0 %v226
      %v413 = vpop.f32.mrb[0].mxu0
      %v414 = vadd.f32 %v184, %v413
      %v415 = vpop.f32.mrb[0].mxu0
      %416 = vmatprep.mubr.f32.mxu0 0.0
      %417 = vmatmul.mubr.f32.gmra.mrb[0].mxu0 %v229
      %v418 = vpop.f32.mrb[0].mxu0
      %v419 = vadd.f32 %v184, %v418
      %v420 = vpop.f32.mrb[0].mxu0
      %421 = vmatprep.mubr.f32.mxu0 0.0
      %422 = vmatmul.mubr.f32.gmra.mrb[0].mxu0 %v232
      %v423 = vpop.f32.mrb[0].mxu0
      %v424 = vadd.f32 %v184, %v423
      %v425 = vpop.f32.mrb[0].mxu0
      %426 = vmatprep.mubr.f32.mxu0 0.0
      %427 = vmatmul.mubr.f32.gmra.mrb[0].mxu0 %v235
      %v428 = vpop.f32.mrb[0].mxu0
      %v429 = vadd.f32 %v184, %v428
      %v430 = vpop.f32.mrb[0].mxu0
      %431 = vmatprep.mubr.f32.mxu0 0.0
      %432 = vmatmul.mubr.f32.gmra.mrb[0].mxu0 %v238
      %v433 = vpop.f32.mrb[0].mxu0
      %v434 = vadd.f32 %v184, %v433
      %v435 = vpop.f32.mrb[0].mxu0
      %436 = vmatprep.mubr.f32.mxu0 0.0
      %437 = vmatmul.mubr.f32.gmra.mrb[0].mxu0 %v241
      %v438 = vpop.f32.mrb[0].mxu0
      %v439 = vadd.f32 %v184, %v438
      %v440 = vpop.f32.mrb[0].mxu0
      %441 = vmatprep.mubr.f32.mxu0 0.0
      %442 = vmatmul.mubr.f32.gmra.mrb[0].mxu0 %v244
      %v443 = vpop.f32.mrb[0].mxu0
      %v444 = vadd.f32 %v184, %v443
      %v445 = vpop.f32.mrb[0].mxu0
      %446 = vmatprep.mubr.f32.mxu0 0.0
      %447 = vmatmul.mubr.f32.gmra.mrb[0].mxu0 %v247
      %v448 = vpop.f32.mrb[0].mxu0
      %v449 = vadd.f32 %v184, %v448
      %v450 = vpop.f32.mrb[0].mxu0
      %451 = vmatprep.mubr.f32.mxu0 0.0
      %452 = vmatmul.mubr.f32.gmra.mrb[0].mxu0 %v250
      %v453 = vpop.f32.mrb[0].mxu0
      %v454 = vadd.f32 %v184, %v453
      %v455 = vpop.f32.mrb[0].mxu0
      %456 = vmatprep.mubr.f32.mxu0 0.0
      %457 = vmatmul.mubr.f32.gmra.mrb[0].mxu0 %v253
      %v458 = vpop.f32.mrb[0].mxu0
      %v459 = vadd.f32 %v184, %v458
      %v460 = vpop.f32.mrb[0].mxu0
      %461 = vmatprep.mubr.f32.mxu0 0.0
      %462 = vmatmul.mubr.f32.gmra.mrb[0].mxu0 %v256
      %v463 = vpop.f32.mrb[0].mxu0
      %v464 = vadd.f32 %v184, %v463
      %v465 = vpop.f32.mrb[0].mxu0
      %466 = vmatprep.mubr.f32.mxu0 0.0
      %467 = vmatmul.mubr.f32.gmra.mrb[0].mxu0 %v259
      %v468 = vpop.f32.mrb[0].mxu0
      %v469 = vadd.f32 %v184, %v468
      %v470 = vpop.f32.mrb[0].mxu0
      %471 = vmatprep.mubr.f32.mxu0 0.0
      %472 = vmatmul.mubr.f32.gmra.mrb[0].mxu0 %v262
      %v473 = vpop.f32.mrb[0].mxu0
      %v474 = vadd.f32 %v184, %v473
      %v475 = vpop.f32.mrb[0].mxu0
      %476 = vmatprep.mubr.f32.mxu0 0.0
      %477 = vmatmul.mubr.f32.gmra.mrb[0].mxu0 %v265
      %v478 = vpop.f32.mrb[0].mxu0
      %v479 = vadd.f32 %v184, %v478
      %v480 = vpop.f32.mrb[0].mxu0
      %481 = vmatprep.mubr.f32.mxu0 0.0
      %482 = vmatmul.mubr.f32.gmra.mrb[0].mxu0 %v268
      %v483 = vpop.f32.mrb[0].mxu0
      %v484 = vadd.f32 %v184, %v483
      %v485 = vpop.f32.mrb[0].mxu0
      %486 = vmatprep.mubr.f32.mxu0 0.0
      %487 = vmatmul.mubr.f32.gmra.mrb[0].mxu0 %v271
      %v488 = vpop.f32.mrb[0].mxu0
      %v489 = vadd.f32 %v184, %v488
      %v490 = vpop.f32.mrb[0].mxu0
      %491 = vmatprep.mubr.f32.mxu0 0.0
      %492 = vmatmul.mubr.f32.gmra.mrb[0].mxu0 %v274
      %v493 = vpop.f32.mrb[0].mxu0
      %v494 = vadd.f32 %v184, %v493
      %v495 = vpop.f32.mrb[0].mxu0
      %496 = vmatprep.mubr.f32.mxu0 0.0
      %497 = vmatmul.mubr.f32.gmra.mrb[0].mxu0 %v277
      %v498 = vpop.f32.mrb[0].mxu0
      %v499 = vadd.f32 %v184, %v498
      %v500 = vpop.f32.mrb[0].mxu0
      %501 = vmatprep.mubr.f32.mxu0 0.0
      %502 = vmatmul.mubr.f32.gmra.mrb[0].mxu0 %v280
      %v503 = vpop.f32.mrb[0].mxu0
      %v504 = vadd.f32 %v184, %v503
      %v505 = vpop.f32.mrb[0].mxu0
      %506 = vdwg.mxu0
      %v507 = vsub.f32 0.0, %v349
      %v508 = vsub.f32 0.0, %v354
      %v509 = vsub.f32 0.0, %v359
      %v510 = vsub.f32 0.0, %v364
      %v511 = vsub.f32 0.0, %v369
      %v512 = vsub.f32 0.0, %v374
      %v513 = vsub.f32 0.0, %v379
      %v514 = vsub.f32 0.0, %v384
      %v515 = vsub.f32 0.0, %v389
      %v516 = vsub.f32 0.0, %v394
      %v517 = vsub.f32 0.0, %v399
      %v518 = vsub.f32 0.0, %v404
      %v519 = vsub.f32 0.0, %v409
      %v520 = vsub.f32 0.0, %v414
      %v521 = vsub.f32 0.0, %v419
      %v522 = vsub.f32 0.0, %v424
      %v523 = vsub.f32 0.0, %v429
      %v524 = vsub.f32 0.0, %v434
      %v525 = vsub.f32 0.0, %v439
      %v526 = vsub.f32 0.0, %v444
      %v527 = vsub.f32 0.0, %v449
      %v528 = vsub.f32 0.0, %v454
      %v529 = vsub.f32 0.0, %v459
      %v530 = vsub.f32 0.0, %v464
      %v531 = vsub.f32 0.0, %v469
      %v532 = vsub.f32 0.0, %v474
      %v533 = vsub.f32 0.0, %v479
      %v534 = vsub.f32 0.0, %v484
      %v535 = vsub.f32 0.0, %v489
      %v536 = vsub.f32 0.0, %v494
      %v537 = vsub.f32 0.0, %v499
      %v538 = vsub.f32 0.0, %v504
      %v539 = vmul.f32 %v507, 1.442695
      %v540 = vpow.pop %v539
      %v541 = vmul.f32 %v508, 1.442695
      %v542 = vpow.pop %v541
      %v543 = vmul.f32 %v509, 1.442695
      %v544 = vpow.pop %v543
      %v545 = vmul.f32 %v510, 1.442695
      %v546 = vpow.pop %v545
      %v547 = vmul.f32 %v511, 1.442695
      %v548 = vpow.pop %v547
      %v549 = vmul.f32 %v512, 1.442695
      %v550 = vpow.pop %v549
      %v551 = vmul.f32 %v513, 1.442695
      %v552 = vpow.pop %v551
      %v553 = vmul.f32 %v514, 1.442695
      %v554 = vpow.pop %v553
      %v555 = vmul.f32 %v515, 1.442695
      %v556 = vpow.pop %v555
      %v557 = vmul.f32 %v516, 1.442695
      %v558 = vpow.pop %v557
      %v559 = vmul.f32 %v517, 1.442695
      %v560 = vpow.pop %v559
      %v561 = vmul.f32 %v518, 1.442695
      %v562 = vpow.pop %v561
      %v563 = vmul.f32 %v519, 1.442695
      %v564 = vpow.pop %v563
      %v565 = vmul.f32 %v520, 1.442695
      %v566 = vpow.pop %v565
      %v567 = vmul.f32 %v521, 1.442695
      %v568 = vpow.pop %v567
      %v569 = vmul.f32 %v522, 1.442695
      %v570 = vpow.pop %v569
      %v571 = vmul.f32 %v523, 1.442695
      %v572 = vpow.pop %v571
      %v573 = vmul.f32 %v524, 1.442695
      %v574 = vpow.pop %v573
      %v575 = vmul.f32 %v525, 1.442695
      %v576 = vpow.pop %v575
      %v577 = vmul.f32 %v526, 1.442695
      %v578 = vpow.pop %v577
      %v579 = vmul.f32 %v527, 1.442695
      %v580 = vpow.pop %v579
      %v581 = vmul.f32 %v528, 1.442695
      %v582 = vpow.pop %v581
      %v583 = vmul.f32 %v529, 1.442695
      %v584 = vpow.pop %v583
      %v585 = vmul.f32 %v530, 1.442695
      %v586 = vpow.pop %v585
      %v587 = vmul.f32 %v531, 1.442695
      %v588 = vpow.pop %v587
      %v589 = vmul.f32 %v532, 1.442695
      %v590 = vpow.pop %v589
      %v591 = vmul.f32 %v533, 1.442695
      %v592 = vpow.pop %v591
      %v593 = vmul.f32 %v534, 1.442695
      %v594 = vpow.pop %v593
      %v595 = vmul.f32 %v535, 1.442695
      %v596 = vpow.pop %v595
      %v597 = vmul.f32 %v536, 1.442695
      %v598 = vpow.pop %v597
      %v599 = vmul.f32 %v537, 1.442695
      %v600 = vpow.pop %v599
      %v601 = vmul.f32 %v538, 1.442695
      %v602 = vpow.pop %v601
      %v603 = vadd.f32 %v540, 1.0
      %v604 = vadd.f32 %v542, 1.0
      %v605 = vadd.f32 %v544, 1.0
      %v606 = vadd.f32 %v546, 1.0
      %v607 = vadd.f32 %v548, 1.0
      %v608 = vadd.f32 %v550, 1.0
      %v609 = vadd.f32 %v552, 1.0
      %v610 = vadd.f32 %v554, 1.0
      %v611 = vadd.f32 %v556, 1.0
      %v612 = vadd.f32 %v558, 1.0
      %v613 = vadd.f32 %v560, 1.0
      %v614 = vadd.f32 %v562, 1.0
      %v615 = vadd.f32 %v564, 1.0
      %v616 = vadd.f32 %v566, 1.0
      %v617 = vadd.f32 %v568, 1.0
      %v618 = vadd.f32 %v570, 1.0
      %v619 = vadd.f32 %v572, 1.0
      %v620 = vadd.f32 %v574, 1.0
      %v621 = vadd.f32 %v576, 1.0
      %v622 = vadd.f32 %v578, 1.0
      %v623 = vadd.f32 %v580, 1.0
      %v624 = vadd.f32 %v582, 1.0
      %v625 = vadd.f32 %v584, 1.0
      %v626 = vadd.f32 %v586, 1.0
      %v627 = vadd.f32 %v588, 1.0
      %v628 = vadd.f32 %v590, 1.0
      %v629 = vadd.f32 %v592, 1.0
      %v630 = vadd.f32 %v594, 1.0
      %v631 = vadd.f32 %v596, 1.0
      %v632 = vadd.f32 %v598, 1.0
      %v633 = vadd.f32 %v600, 1.0
      %v634 = vadd.f32 %v602, 1.0
      %v635 = vrcp.pop %v603
      %v636 = vrcp.pop %v604
      %v637 = vrcp.pop %v605
      %v638 = vrcp.pop %v606
      %v639 = vrcp.pop %v607
      %v640 = vrcp.pop %v608
      %v641 = vrcp.pop %v609
      %v642 = vrcp.pop %v610
      %v643 = vrcp.pop %v611
      %v644 = vrcp.pop %v612
      %v645 = vrcp.pop %v613
      %v646 = vrcp.pop %v614
      %v647 = vrcp.pop %v615
      %v648 = vrcp.pop %v616
      %v649 = vrcp.pop %v617
      %v650 = vrcp.pop %v618
      %v651 = vrcp.pop %v619
      %v652 = vrcp.pop %v620
      %v653 = vrcp.pop %v621
      %v654 = vrcp.pop %v622
      %v655 = vrcp.pop %v623
      %v656 = vrcp.pop %v624
      %v657 = vrcp.pop %v625
      %v658 = vrcp.pop %v626
      %v659 = vrcp.pop %v627
      %v660 = vrcp.pop %v628
      %v661 = vrcp.pop %v629
      %v662 = vrcp.pop %v630
      %v663 = vrcp.pop %v631
      %v664 = vrcp.pop %v632
      %v665 = vrcp.pop %v633
      %v666 = vrcp.pop %v634
      %v667 = vld [vmem:[%s1 + $0x9] sm:$0x1]
      %v668 = vlaneseq
      %v669 = vshrl.u32 %v668, 7
      %v670 = vsub.s32 0, %v669
      %v671 = vrot.slane %v667, %v670
      %v672 = vmul.f32 %v635, %v671
      %v673 = vmul.f32 %v636, %v671
      %v674 = vmul.f32 %v637, %v671
      %v675 = vmul.f32 %v638, %v671
      %v676 = vmul.f32 %v639, %v671
      %v677 = vmul.f32 %v640, %v671
      %v678 = vmul.f32 %v641, %v671
      %v679 = vmul.f32 %v642, %v671
      %v680 = vmul.f32 %v643, %v671
      %v681 = vmul.f32 %v644, %v671
      %v682 = vmul.f32 %v645, %v671
      %v683 = vmul.f32 %v646, %v671
      %v684 = vmul.f32 %v647, %v671
      %v685 = vmul.f32 %v648, %v671
      %v686 = vmul.f32 %v649, %v671
      %v687 = vmul.f32 %v650, %v671
      %v688 = vmul.f32 %v651, %v671
      %v689 = vmul.f32 %v652, %v671
      %v690 = vmul.f32 %v653, %v671
      %v691 = vmul.f32 %v654, %v671
      %v692 = vmul.f32 %v655, %v671
      %v693 = vmul.f32 %v656, %v671
      %v694 = vmul.f32 %v657, %v671
      %v695 = vmul.f32 %v658, %v671
      %v696 = vmul.f32 %v659, %v671
      %v697 = vmul.f32 %v660, %v671
      %v698 = vmul.f32 %v661, %v671
      %v699 = vmul.f32 %v662, %v671
      %v700 = vmul.f32 %v663, %v671
      %v701 = vmul.f32 %v664, %v671
      %v702 = vmul.f32 %v665, %v671
      %v703 = vmul.f32 %v666, %v671
      %704 = vadd.xlane.f32.xlu0 %v672
      %v705 = vpop.xlane.xlu0 %704
      %706 = vadd.xlane.f32.xlu0 %v673
      %v707 = vpop.xlane.xlu0 %706
      %708 = vadd.xlane.f32.xlu0 %v674
      %v709 = vpop.xlane.xlu0 %708
      %710 = vadd.xlane.f32.xlu0 %v675
      %v711 = vpop.xlane.xlu0 %710
      %712 = vadd.xlane.f32.xlu0 %v676
      %v713 = vpop.xlane.xlu0 %712
      %714 = vadd.xlane.f32.xlu0 %v677
      %v715 = vpop.xlane.xlu0 %714
      %716 = vadd.xlane.f32.xlu0 %v678
      %v717 = vpop.xlane.xlu0 %716
      %718 = vadd.xlane.f32.xlu0 %v679
      %v719 = vpop.xlane.xlu0 %718
      %720 = vadd.xlane.f32.xlu0 %v680
      %v721 = vpop.xlane.xlu0 %720
      %722 = vadd.xlane.f32.xlu0 %v681
      %v723 = vpop.xlane.xlu0 %722
      %724 = vadd.xlane.f32.xlu0 %v682
      %v725 = vpop.xlane.xlu0 %724
      %726 = vadd.xlane.f32.xlu0 %v683
      %v727 = vpop.xlane.xlu0 %726
      %728 = vadd.xlane.f32.xlu0 %v684
      %v729 = vpop.xlane.xlu0 %728
      %730 = vadd.xlane.f32.xlu0 %v685
      %v731 = vpop.xlane.xlu0 %730
      %732 = vadd.xlane.f32.xlu0 %v686
      %v733 = vpop.xlane.xlu0 %732
      %734 = vadd.xlane.f32.xlu0 %v687
      %v735 = vpop.xlane.xlu0 %734
      %736 = vadd.xlane.f32.xlu0 %v688
      %v737 = vpop.xlane.xlu0 %736
      %738 = vadd.xlane.f32.xlu0 %v689
      %v739 = vpop.xlane.xlu0 %738
      %740 = vadd.xlane.f32.xlu0 %v690
      %v741 = vpop.xlane.xlu0 %740
      %742 = vadd.xlane.f32.xlu0 %v691
      %v743 = vpop.xlane.xlu0 %742
      %744 = vadd.xlane.f32.xlu0 %v692
      %v745 = vpop.xlane.xlu0 %744
      %746 = vadd.xlane.f32.xlu0 %v693
      %v747 = vpop.xlane.xlu0 %746
      %748 = vadd.xlane.f32.xlu0 %v694
      %v749 = vpop.xlane.xlu0 %748
      %750 = vadd.xlane.f32.xlu0 %v695
      %v751 = vpop.xlane.xlu0 %750
      %752 = vadd.xlane.f32.xlu0 %v696
      %v753 = vpop.xlane.xlu0 %752
      %754 = vadd.xlane.f32.xlu0 %v697
      %v755 = vpop.xlane.xlu0 %754
      %756 = vadd.xlane.f32.xlu0 %v698
      %v757 = vpop.xlane.xlu0 %756
      %758 = vadd.xlane.f32.xlu0 %v699
      %v759 = vpop.xlane.xlu0 %758
      %760 = vadd.xlane.f32.xlu0 %v700
      %v761 = vpop.xlane.xlu0 %760
      %762 = vadd.xlane.f32.xlu0 %v701
      %v763 = vpop.xlane.xlu0 %762
      %764 = vadd.xlane.f32.xlu0 %v702
      %v765 = vpop.xlane.xlu0 %764
      %766 = vadd.xlane.f32.xlu0 %v703
      %v767 = vpop.xlane.xlu0 %766
      %v768 = vld [vmem:[%s1 + $0xa] sm:$0x1]
      %v769 = vlaneseq
      %v770 = vshrl.u32 %v769, 7
      %v771 = vsub.s32 0, %v770
      %v772 = vrot.slane %v768, %v771
      %v773 = vmul.f32 %v635, %v772
      %v774 = vmul.f32 %v636, %v772
      %v775 = vmul.f32 %v637, %v772
      %v776 = vmul.f32 %v638, %v772
      %v777 = vmul.f32 %v639, %v772
      %v778 = vmul.f32 %v640, %v772
      %v779 = vmul.f32 %v641, %v772
      %v780 = vmul.f32 %v642, %v772
      %v781 = vmul.f32 %v643, %v772
      %v782 = vmul.f32 %v644, %v772
      %v783 = vmul.f32 %v645, %v772
      %v784 = vmul.f32 %v646, %v772
      %v785 = vmul.f32 %v647, %v772
      %v786 = vmul.f32 %v648, %v772
      %v787 = vmul.f32 %v649, %v772
      %v788 = vmul.f32 %v650, %v772
      %v789 = vmul.f32 %v651, %v772
      %v790 = vmul.f32 %v652, %v772
      %v791 = vmul.f32 %v653, %v772
      %v792 = vmul.f32 %v654, %v772
      %v793 = vmul.f32 %v655, %v772
      %v794 = vmul.f32 %v656, %v772
      %v795 = vmul.f32 %v657, %v772
      %v796 = vmul.f32 %v658, %v772
      %v797 = vmul.f32 %v659, %v772
      %v798 = vmul.f32 %v660, %v772
      %v799 = vmul.f32 %v661, %v772
      %v800 = vmul.f32 %v662, %v772
      %v801 = vmul.f32 %v663, %v772
      %v802 = vmul.f32 %v664, %v772
      %v803 = vmul.f32 %v665, %v772
      %v804 = vmul.f32 %v666, %v772
      %805 = vadd.xlane.f32.xlu0 %v773
      %v806 = vpop.xlane.xlu0 %805
      %807 = vadd.xlane.f32.xlu0 %v774
      %v808 = vpop.xlane.xlu0 %807
      %809 = vadd.xlane.f32.xlu0 %v775
      %v810 = vpop.xlane.xlu0 %809
      %811 = vadd.xlane.f32.xlu0 %v776
      %v812 = vpop.xlane.xlu0 %811
      %813 = vadd.xlane.f32.xlu0 %v777
      %v814 = vpop.xlane.xlu0 %813
      %815 = vadd.xlane.f32.xlu0 %v778
      %v816 = vpop.xlane.xlu0 %815
      %817 = vadd.xlane.f32.xlu0 %v779
      %v818 = vpop.xlane.xlu0 %817
      %819 = vadd.xlane.f32.xlu0 %v780
      %v820 = vpop.xlane.xlu0 %819
      %821 = vadd.xlane.f32.xlu0 %v781
      %v822 = vpop.xlane.xlu0 %821
      %823 = vadd.xlane.f32.xlu0 %v782
      %v824 = vpop.xlane.xlu0 %823
      %825 = vadd.xlane.f32.xlu0 %v783
      %v826 = vpop.xlane.xlu0 %825
      %827 = vadd.xlane.f32.xlu0 %v784
      %v828 = vpop.xlane.xlu0 %827
      %829 = vadd.xlane.f32.xlu0 %v785
      %v830 = vpop.xlane.xlu0 %829
      %831 = vadd.xlane.f32.xlu0 %v786
      %v832 = vpop.xlane.xlu0 %831
      %833 = vadd.xlane.f32.xlu0 %v787
      %v834 = vpop.xlane.xlu0 %833
      %835 = vadd.xlane.f32.xlu0 %v788
      %v836 = vpop.xlane.xlu0 %835
      %837 = vadd.xlane.f32.xlu0 %v789
      %v838 = vpop.xlane.xlu0 %837
      %839 = vadd.xlane.f32.xlu0 %v790
      %v840 = vpop.xlane.xlu0 %839
      %841 = vadd.xlane.f32.xlu0 %v791
      %v842 = vpop.xlane.xlu0 %841
      %843 = vadd.xlane.f32.xlu0 %v792
      %v844 = vpop.xlane.xlu0 %843
      %845 = vadd.xlane.f32.xlu0 %v793
      %v846 = vpop.xlane.xlu0 %845
      %847 = vadd.xlane.f32.xlu0 %v794
      %v848 = vpop.xlane.xlu0 %847
      %849 = vadd.xlane.f32.xlu0 %v795
      %v850 = vpop.xlane.xlu0 %849
      %851 = vadd.xlane.f32.xlu0 %v796
      %v852 = vpop.xlane.xlu0 %851
      %853 = vadd.xlane.f32.xlu0 %v797
      %v854 = vpop.xlane.xlu0 %853
      %855 = vadd.xlane.f32.xlu0 %v798
      %v856 = vpop.xlane.xlu0 %855
      %857 = vadd.xlane.f32.xlu0 %v799
      %v858 = vpop.xlane.xlu0 %857
      %859 = vadd.xlane.f32.xlu0 %v800
      %v860 = vpop.xlane.xlu0 %859
      %861 = vadd.xlane.f32.xlu0 %v801
      %v862 = vpop.xlane.xlu0 %861
      %863 = vadd.xlane.f32.xlu0 %v802
      %v864 = vpop.xlane.xlu0 %863
      %865 = vadd.xlane.f32.xlu0 %v803
      %v866 = vpop.xlane.xlu0 %865
      %867 = vadd.xlane.f32.xlu0 %v804
      %v868 = vpop.xlane.xlu0 %867
      %v869 = vld [vmem:[%s1 + $0xc] sm:$0x1]
      %v870 = vlaneseq
      %v871 = vshrl.u32 %v870, 7
      %v872 = vsub.s32 0, %v871
      %v873 = vrot.slane %v869, %v872
      %v874 = vmul.f32 %v705, %v873
      %v875 = vmul.f32 %v707, %v873
      %v876 = vmul.f32 %v709, %v873
      %v877 = vmul.f32 %v711, %v873
      %v878 = vmul.f32 %v713, %v873
      %v879 = vmul.f32 %v715, %v873
      %v880 = vmul.f32 %v717, %v873
      %v881 = vmul.f32 %v719, %v873
      %v882 = vmul.f32 %v721, %v873
      %v883 = vmul.f32 %v723, %v873
      %v884 = vmul.f32 %v725, %v873
      %v885 = vmul.f32 %v727, %v873
      %v886 = vmul.f32 %v729, %v873
      %v887 = vmul.f32 %v731, %v873
      %v888 = vmul.f32 %v733, %v873
      %v889 = vmul.f32 %v735, %v873
      %v890 = vmul.f32 %v737, %v873
      %v891 = vmul.f32 %v739, %v873
      %v892 = vmul.f32 %v741, %v873
      %v893 = vmul.f32 %v743, %v873
      %v894 = vmul.f32 %v745, %v873
      %v895 = vmul.f32 %v747, %v873
      %v896 = vmul.f32 %v749, %v873
      %v897 = vmul.f32 %v751, %v873
      %v898 = vmul.f32 %v753, %v873
      %v899 = vmul.f32 %v755, %v873
      %v900 = vmul.f32 %v757, %v873
      %v901 = vmul.f32 %v759, %v873
      %v902 = vmul.f32 %v761, %v873
      %v903 = vmul.f32 %v763, %v873
      %v904 = vmul.f32 %v765, %v873
      %v905 = vmul.f32 %v767, %v873
      %v906 = vld [vmem:[%s1 + $0xd] sm:$0x1]
      %v907 = vlaneseq
      %v908 = vshrl.u32 %v907, 7
      %v909 = vsub.s32 0, %v908
      %v910 = vrot.slane %v906, %v909
      %v911 = vmul.f32 %v806, %v910
      %v912 = vmul.f32 %v808, %v910
      %v913 = vmul.f32 %v810, %v910
      %v914 = vmul.f32 %v812, %v910
      %v915 = vmul.f32 %v814, %v910
      %v916 = vmul.f32 %v816, %v910
      %v917 = vmul.f32 %v818, %v910
      %v918 = vmul.f32 %v820, %v910
      %v919 = vmul.f32 %v822, %v910
      %v920 = vmul.f32 %v824, %v910
      %v921 = vmul.f32 %v826, %v910
      %v922 = vmul.f32 %v828, %v910
      %v923 = vmul.f32 %v830, %v910
      %v924 = vmul.f32 %v832, %v910
      %v925 = vmul.f32 %v834, %v910
      %v926 = vmul.f32 %v836, %v910
      %v927 = vmul.f32 %v838, %v910
      %v928 = vmul.f32 %v840, %v910
      %v929 = vmul.f32 %v842, %v910
      %v930 = vmul.f32 %v844, %v910
      %v931 = vmul.f32 %v846, %v910
      %v932 = vmul.f32 %v848, %v910
      %v933 = vmul.f32 %v850, %v910
      %v934 = vmul.f32 %v852, %v910
      %v935 = vmul.f32 %v854, %v910
      %v936 = vmul.f32 %v856, %v910
      %v937 = vmul.f32 %v858, %v910
      %v938 = vmul.f32 %v860, %v910
      %v939 = vmul.f32 %v862, %v910
      %v940 = vmul.f32 %v864, %v910
      %v941 = vmul.f32 %v866, %v910
      %v942 = vmul.f32 %v868, %v910
      %v943 = vadd.f32 %v874, %v911
      %v944 = vadd.f32 %v875, %v912
      %v945 = vadd.f32 %v876, %v913
      %v946 = vadd.f32 %v877, %v914
      %v947 = vadd.f32 %v878, %v915
      %v948 = vadd.f32 %v879, %v916
      %v949 = vadd.f32 %v880, %v917
      %v950 = vadd.f32 %v881, %v918
      %v951 = vadd.f32 %v882, %v919
      %v952 = vadd.f32 %v883, %v920
      %v953 = vadd.f32 %v884, %v921
      %v954 = vadd.f32 %v885, %v922
      %v955 = vadd.f32 %v886, %v923
      %v956 = vadd.f32 %v887, %v924
      %v957 = vadd.f32 %v888, %v925
      %v958 = vadd.f32 %v889, %v926
      %v959 = vadd.f32 %v890, %v927
      %v960 = vadd.f32 %v891, %v928
      %v961 = vadd.f32 %v892, %v929
      %v962 = vadd.f32 %v893, %v930
      %v963 = vadd.f32 %v894, %v931
      %v964 = vadd.f32 %v895, %v932
      %v965 = vadd.f32 %v896, %v933
      %v966 = vadd.f32 %v897, %v934
      %v967 = vadd.f32 %v898, %v935
      %v968 = vadd.f32 %v899, %v936
      %v969 = vadd.f32 %v900, %v937
      %v970 = vadd.f32 %v901, %v938
      %v971 = vadd.f32 %v902, %v939
      %v972 = vadd.f32 %v903, %v940
      %v973 = vadd.f32 %v904, %v941
      %v974 = vadd.f32 %v905, %v942
      %v975 = vld [vmem:[%s1 + $0xb] sm:$0x1]
      %v976 = vlaneseq
      %v977 = vshrl.u32 %v976, 7
      %v978 = vsub.s32 0, %v977
      %v979 = vrot.slane %v975, %v978
      %v980 = vadd.f32 %v943, %v979
      %v981 = vadd.f32 %v944, %v979
      %v982 = vadd.f32 %v945, %v979
      %v983 = vadd.f32 %v946, %v979
      %v984 = vadd.f32 %v947, %v979
      %v985 = vadd.f32 %v948, %v979
      %v986 = vadd.f32 %v949, %v979
      %v987 = vadd.f32 %v950, %v979
      %v988 = vadd.f32 %v951, %v979
      %v989 = vadd.f32 %v952, %v979
      %v990 = vadd.f32 %v953, %v979
      %v991 = vadd.f32 %v954, %v979
      %v992 = vadd.f32 %v955, %v979
      %v993 = vadd.f32 %v956, %v979
      %v994 = vadd.f32 %v957, %v979
      %v995 = vadd.f32 %v958, %v979
      %v996 = vadd.f32 %v959, %v979
      %v997 = vadd.f32 %v960, %v979
      %v998 = vadd.f32 %v961, %v979
      %v999 = vadd.f32 %v962, %v979
      %v1000 = vadd.f32 %v963, %v979
      %v1001 = vadd.f32 %v964, %v979
      %v1002 = vadd.f32 %v965, %v979
      %v1003 = vadd.f32 %v966, %v979
      %v1004 = vadd.f32 %v967, %v979
      %v1005 = vadd.f32 %v968, %v979
      %v1006 = vadd.f32 %v969, %v979
      %v1007 = vadd.f32 %v970, %v979
      %v1008 = vadd.f32 %v971, %v979
      %v1009 = vadd.f32 %v972, %v979
      %v1010 = vadd.f32 %v973, %v979
      %v1011 = vadd.f32 %v974, %v979
      %v1012 = vsub.f32 0.0, %v980
      %v1013 = vsub.f32 0.0, %v981
      %v1014 = vsub.f32 0.0, %v982
      %v1015 = vsub.f32 0.0, %v983
      %v1016 = vsub.f32 0.0, %v984
      %v1017 = vsub.f32 0.0, %v985
      %v1018 = vsub.f32 0.0, %v986
      %v1019 = vsub.f32 0.0, %v987
      %v1020 = vsub.f32 0.0, %v988
      %v1021 = vsub.f32 0.0, %v989
      %v1022 = vsub.f32 0.0, %v990
      %v1023 = vsub.f32 0.0, %v991
      %v1024 = vsub.f32 0.0, %v992
      %v1025 = vsub.f32 0.0, %v993
      %v1026 = vsub.f32 0.0, %v994
      %v1027 = vsub.f32 0.0, %v995
      %v1028 = vsub.f32 0.0, %v996
      %v1029 = vsub.f32 0.0, %v997
      %v1030 = vsub.f32 0.0, %v998
      %v1031 = vsub.f32 0.0, %v999
      %v1032 = vsub.f32 0.0, %v1000
      %v1033 = vsub.f32 0.0, %v1001
      %v1034 = vsub.f32 0.0, %v1002
      %v1035 = vsub.f32 0.0, %v1003
      %v1036 = vsub.f32 0.0, %v1004
      %v1037 = vsub.f32 0.0, %v1005
      %v1038 = vsub.f32 0.0, %v1006
      %v1039 = vsub.f32 0.0, %v1007
      %v1040 = vsub.f32 0.0, %v1008
      %v1041 = vsub.f32 0.0, %v1009
      %v1042 = vsub.f32 0.0, %v1010
      %v1043 = vsub.f32 0.0, %v1011
      %v1044 = vmul.f32 %v1012, 1.442695
      %v1045 = vpow.pop %v1044
      %v1046 = vmul.f32 %v1013, 1.442695
      %v1047 = vpow.pop %v1046
      %v1048 = vmul.f32 %v1014, 1.442695
      %v1049 = vpow.pop %v1048
      %v1050 = vmul.f32 %v1015, 1.442695
      %v1051 = vpow.pop %v1050
      %v1052 = vmul.f32 %v1016, 1.442695
      %v1053 = vpow.pop %v1052
      %v1054 = vmul.f32 %v1017, 1.442695
      %v1055 = vpow.pop %v1054
      %v1056 = vmul.f32 %v1018, 1.442695
      %v1057 = vpow.pop %v1056
      %v1058 = vmul.f32 %v1019, 1.442695
      %v1059 = vpow.pop %v1058
      %v1060 = vmul.f32 %v1020, 1.442695
      %v1061 = vpow.pop %v1060
      %v1062 = vmul.f32 %v1021, 1.442695
      %v1063 = vpow.pop %v1062
      %v1064 = vmul.f32 %v1022, 1.442695
      %v1065 = vpow.pop %v1064
      %v1066 = vmul.f32 %v1023, 1.442695
      %v1067 = vpow.pop %v1066
      %v1068 = vmul.f32 %v1024, 1.442695
      %v1069 = vpow.pop %v1068
      %v1070 = vmul.f32 %v1025, 1.442695
      %v1071 = vpow.pop %v1070
      %v1072 = vmul.f32 %v1026, 1.442695
      %v1073 = vpow.pop %v1072
      %v1074 = vmul.f32 %v1027, 1.442695
      %v1075 = vpow.pop %v1074
      %v1076 = vmul.f32 %v1028, 1.442695
      %v1077 = vpow.pop %v1076
      %v1078 = vmul.f32 %v1029, 1.442695
      %v1079 = vpow.pop %v1078
      %v1080 = vmul.f32 %v1030, 1.442695
      %v1081 = vpow.pop %v1080
      %v1082 = vmul.f32 %v1031, 1.442695
      %v1083 = vpow.pop %v1082
      %v1084 = vmul.f32 %v1032, 1.442695
      %v1085 = vpow.pop %v1084
      %v1086 = vmul.f32 %v1033, 1.442695
      %v1087 = vpow.pop %v1086
      %v1088 = vmul.f32 %v1034, 1.442695
      %v1089 = vpow.pop %v1088
      %v1090 = vmul.f32 %v1035, 1.442695
      %v1091 = vpow.pop %v1090
      %v1092 = vmul.f32 %v1036, 1.442695
      %v1093 = vpow.pop %v1092
      %v1094 = vmul.f32 %v1037, 1.442695
      %v1095 = vpow.pop %v1094
      %v1096 = vmul.f32 %v1038, 1.442695
      %v1097 = vpow.pop %v1096
      %v1098 = vmul.f32 %v1039, 1.442695
      %v1099 = vpow.pop %v1098
      %v1100 = vmul.f32 %v1040, 1.442695
      %v1101 = vpow.pop %v1100
      %v1102 = vmul.f32 %v1041, 1.442695
      %v1103 = vpow.pop %v1102
      %v1104 = vmul.f32 %v1042, 1.442695
      %v1105 = vpow.pop %v1104
      %v1106 = vmul.f32 %v1043, 1.442695
      %v1107 = vpow.pop %v1106
      %v1108 = vadd.f32 %v1045, 1.0
      %v1109 = vadd.f32 %v1047, 1.0
      %v1110 = vadd.f32 %v1049, 1.0
      %v1111 = vadd.f32 %v1051, 1.0
      %v1112 = vadd.f32 %v1053, 1.0
      %v1113 = vadd.f32 %v1055, 1.0
      %v1114 = vadd.f32 %v1057, 1.0
      %v1115 = vadd.f32 %v1059, 1.0
      %v1116 = vadd.f32 %v1061, 1.0
      %v1117 = vadd.f32 %v1063, 1.0
      %v1118 = vadd.f32 %v1065, 1.0
      %v1119 = vadd.f32 %v1067, 1.0
      %v1120 = vadd.f32 %v1069, 1.0
      %v1121 = vadd.f32 %v1071, 1.0
      %v1122 = vadd.f32 %v1073, 1.0
      %v1123 = vadd.f32 %v1075, 1.0
      %v1124 = vadd.f32 %v1077, 1.0
      %v1125 = vadd.f32 %v1079, 1.0
      %v1126 = vadd.f32 %v1081, 1.0
      %v1127 = vadd.f32 %v1083, 1.0
      %v1128 = vadd.f32 %v1085, 1.0
      %v1129 = vadd.f32 %v1087, 1.0
      %v1130 = vadd.f32 %v1089, 1.0
      %v1131 = vadd.f32 %v1091, 1.0
      %v1132 = vadd.f32 %v1093, 1.0
      %v1133 = vadd.f32 %v1095, 1.0
      %v1134 = vadd.f32 %v1097, 1.0
      %v1135 = vadd.f32 %v1099, 1.0
      %v1136 = vadd.f32 %v1101, 1.0
      %v1137 = vadd.f32 %v1103, 1.0
      %v1138 = vadd.f32 %v1105, 1.0
      %v1139 = vadd.f32 %v1107, 1.0
      %v1140 = vrcp.pop %v1108
      %v1141 = vrcp.pop %v1109
      %v1142 = vrcp.pop %v1110
      %v1143 = vrcp.pop %v1111
      %v1144 = vrcp.pop %v1112
      %v1145 = vrcp.pop %v1113
      %v1146 = vrcp.pop %v1114
      %v1147 = vrcp.pop %v1115
      %v1148 = vrcp.pop %v1116
      %v1149 = vrcp.pop %v1117
      %v1150 = vrcp.pop %v1118
      %v1151 = vrcp.pop %v1119
      %v1152 = vrcp.pop %v1120
      %v1153 = vrcp.pop %v1121
      %v1154 = vrcp.pop %v1122
      %v1155 = vrcp.pop %v1123
      %v1156 = vrcp.pop %v1124
      %v1157 = vrcp.pop %v1125
      %v1158 = vrcp.pop %v1126
      %v1159 = vrcp.pop %v1127
      %v1160 = vrcp.pop %v1128
      %v1161 = vrcp.pop %v1129
      %v1162 = vrcp.pop %v1130
      %v1163 = vrcp.pop %v1131
      %v1164 = vrcp.pop %v1132
      %v1165 = vrcp.pop %v1133
      %v1166 = vrcp.pop %v1134
      %v1167 = vrcp.pop %v1135
      %v1168 = vrcp.pop %v1136
      %v1169 = vrcp.pop %v1137
      %v1170 = vrcp.pop %v1138
      %v1171 = vrcp.pop %v1139
      %1172 = vst [vmem:[%s145] sm:$0xff] %v1140
      %1173 = vst [vmem:[%s145 + $0x8] sm:$0xff] %v1141
      %1174 = vst [vmem:[%s145 + $0x10] sm:$0xff] %v1142
      %1175 = vst [vmem:[%s145 + $0x18] sm:$0xff] %v1143
      %1176 = vst [vmem:[%s145 + $0x20] sm:$0xff] %v1144
      %1177 = vst [vmem:[%s145 + $0x28] sm:$0xff] %v1145
      %1178 = vst [vmem:[%s145 + $0x30] sm:$0xff] %v1146
      %1179 = vst [vmem:[%s145 + $0x38] sm:$0xff] %v1147
      %1180 = vst [vmem:[%s145 + $0x40] sm:$0xff] %v1148
      %1181 = vst [vmem:[%s145 + $0x48] sm:$0xff] %v1149
      %1182 = vst [vmem:[%s145 + $0x50] sm:$0xff] %v1150
      %1183 = vst [vmem:[%s145 + $0x58] sm:$0xff] %v1151
      %1184 = vst [vmem:[%s145 + $0x60] sm:$0xff] %v1152
      %1185 = vst [vmem:[%s145 + $0x68] sm:$0xff] %v1153
      %1186 = vst [vmem:[%s145 + $0x70] sm:$0xff] %v1154
      %1187 = vst [vmem:[%s145 + $0x78] sm:$0xff] %v1155
      %1188 = vst [vmem:[%s145 + $0x80] sm:$0xff] %v1156
      %1189 = vst [vmem:[%s145 + $0x88] sm:$0xff] %v1157
      %1190 = vst [vmem:[%s145 + $0x90] sm:$0xff] %v1158
      %1191 = vst [vmem:[%s145 + $0x98] sm:$0xff] %v1159
      %1192 = vst [vmem:[%s145 + $0xa0] sm:$0xff] %v1160
      %1193 = vst [vmem:[%s145 + $0xa8] sm:$0xff] %v1161
      %1194 = vst [vmem:[%s145 + $0xb0] sm:$0xff] %v1162
      %1195 = vst [vmem:[%s145 + $0xb8] sm:$0xff] %v1163
      %1196 = vst [vmem:[%s145 + $0xc0] sm:$0xff] %v1164
      %1197 = vst [vmem:[%s145 + $0xc8] sm:$0xff] %v1165
      %1198 = vst [vmem:[%s145 + $0xd0] sm:$0xff] %v1166
      %1199 = vst [vmem:[%s145 + $0xd8] sm:$0xff] %v1167
      %1200 = vst [vmem:[%s145 + $0xe0] sm:$0xff] %v1168
      %1201 = vst [vmem:[%s145 + $0xe8] sm:$0xff] %v1169
      %1202 = vst [vmem:[%s145 + $0xf0] sm:$0xff] %v1170
      %1203 = vst [vmem:[%s145 + $0xf8] sm:$0xff] %v1171
      %s1204 = smul.u32 32, %s13
      %p1205 = scmp.lt.s32.totalorder %s1204, 63
      %s1206 = scalar_select %p1205, %s1204, 63
      %s1207 = smul.addr %s1206, 8
      %s1208 = scalar_lea.vmem %s2, %s1207
      // Predicated region
      $region29: #{avoid_model_forward_batched.1} parent=27 // pred_check
        %p1209 = pneg %p78
      $region30: #{avoid_model_forward_batched.1} parent=27 // pred_check_branch
        %1211 = sbr.rel (%p1209) target = $region32
      $region31: #{avoid_model_forward_batched.1} parent=27 // pred_region
        %s1212 = smul.u32 32, %s13
      $region32: #{avoid_model_forward_batched.1} parent=27 // pred_fallthru
        _
    $region28: #{avoid_model_forward_batched.1} parent=5 // pred_fallthru
      _
    %p1213 = scmp.le.s32.totalorder 2, %s8
    // Predicated region
    $region33: #{avoid_model_forward_batched.1} parent=5 // pred_check
      %p1214 = pneg %p1213
    $region34: #{avoid_model_forward_batched.1} parent=5 // pred_check_branch
      %1216 = sbr.rel (%p1214) target = $region36
    $region35: #{avoid_model_forward_batched.1} parent=5 // pred_region
      %s1217 = ssub.s32 %s8, 2
      // Predicated region
      $region37: #{avoid_model_forward_batched.1} parent=35 // pred_check
        %p1218 = pneg %p84
      $region38: #{avoid_model_forward_batched.1} parent=35 // pred_check_branch
        %1220 = sbr.rel (%p1218) target = $region40
      $region39: #{avoid_model_forward_batched.1} parent=35 // pred_region
        %s1221 = smul.u32 32, %s14
        %p1222 = scmp.lt.s32.totalorder %s1221, 63
        %s1223 = scalar_select %p1222, %s1221, 63
        %s1224 = smul.addr %s1223, 8
        %s1225 = scalar_lea.vmem %s2, %s1224
      $region40: #{avoid_model_forward_batched.1} parent=35 // pred_fallthru
        _
    $region36: #{avoid_model_forward_batched.1} parent=5 // pred_fallthru
      _
  $region6: #{avoid_model_forward_batched.1} parent=0 // loop_footer
    %s12 = sadd.s32 1, %s8
  $region7: #{avoid_model_forward_batched.1} parent=0 // loop_footer_branch
    %7 = sbr.rel target = $region3
  $region8: #{avoid_model_forward_batched.1} parent=0 // loop_exit
    _

</llo_original>
